<compile_context>
chip_gen: v7x
topology: tpu7x:2x2x1
jax: 0.10.0
libtpu: 0.0.40
codegen_flags: <defaults>
</compile_context>

<pallas_src>
import functools

import jax
import jax.numpy as jnp
from jax import lax
from jax.experimental import pallas as pl
from jax.experimental.pallas import tpu as pltpu


def _shift_kernel(x_ref, o_ref, *, fold):
    """x_ref / o_ref view: (TILE_B, C_block, T).

    Channels [0, fold)         -> temporal shift left  (last step zeroed)
    Channels [fold, 2*fold)    -> temporal shift right (first step zeroed)
    Channels [2*fold, C_block) -> passthrough (only present in the full-C path)
    """
    T = x_ref.shape[-1]
    c_block = x_ref.shape[1]

    def shift_left(v):   # out[..., t] = v[..., t+1]; out[..., T-1] = 0
        if T == 1:
            return jnp.zeros_like(v)
        zcol = jnp.zeros_like(v[:, :, :1])
        return jnp.concatenate([v[:, :, 1:], zcol], axis=2)

    def shift_right(v):  # out[..., t] = v[..., t-1]; out[..., 0] = 0
        if T == 1:
            return jnp.zeros_like(v)
        zcol = jnp.zeros_like(v[:, :, :1])
        return jnp.concatenate([zcol, v[:, :, : T - 1]], axis=2)

    if c_block == 2 * fold and fold % 8 == 0:
        # Static, sublane-aligned split: no channel select / iota needed (v5e).
        o_ref[:, :fold, :] = shift_left(x_ref[:, :fold, :])
        o_ref[:, fold:, :] = shift_right(x_ref[:, fold:, :])
        return

    x = x_ref[...]
    left = shift_left(x)
    right = shift_right(x)
    c_idx = lax.broadcasted_iota(jnp.int32, (1, c_block, 1), 1)  # narrow iota
    if c_block == 2 * fold:
        out = jnp.where(c_idx < fold, left, right)
    else:
        out = jnp.where(c_idx < fold, left,
                        jnp.where(c_idx < 2 * fold, right, x))
    o_ref[...] = out


def _pick_tile_b(B, c_block, T, itemsize, target_bytes=1 << 20):
    """Largest batch tile that (a) divides B, (b) keeps a block ~<= 1 MiB,
    (c) leaves >= 2 grid steps when B >= 2 (v7x megacore gets both TCs busy)."""
    row_bytes = max(c_block * T * itemsize, 1)
    cap = max(1, target_bytes // row_bytes)
    if B >= 2:
        cap = min(cap, max(1, B // 2))
    divisors = [d for d in range(1, B + 1) if B % d == 0 and d <= cap]
    return max(divisors) if divisors else 1


def no_param_shift(x, *, dim=None, shift_div=8):
    """Pallas TPU implementation of No_param_shift.forward. x: (B, C, T)."""
    B, C, T = x.shape
    if dim is None:
        dim = C
    fold = dim // shift_div

    if fold <= 0:
        return x  # every channel is a passthrough

    # Restrict the kernel to the shifted channels when that range is
    # sublane-aligned; the aliased output keeps the passthrough channels.
    two_fold = 2 * fold
    c_block = two_fold if (two_fold < C and two_fold % 8 == 0) else C

    itemsize = jnp.dtype(x.dtype).itemsize
    tile_b = _pick_tile_b(B, c_block, T, itemsize)

    kernel = functools.partial(_shift_kernel, fold=fold)
    return pl.pallas_call(
        kernel,
        out_shape=jax.ShapeDtypeStruct((B, C, T), x.dtype),
        grid=(B // tile_b,),
        in_specs=[pl.BlockSpec((tile_b, c_block, T), lambda b: (b, 0, 0))],
        out_specs=pl.BlockSpec((tile_b, c_block, T), lambda b: (b, 0, 0)),
        input_output_aliases={0: 0},
        compiler_params=pltpu.CompilerParams(
            dimension_semantics=("parallel",)),
    )(x)


def _reference(x, fold):
    # Pure-JAX reference mirroring the PyTorch in-place slice assignments.
    out = jnp.zeros_like(x)
    out = out.at[:, :fold, :-1].set(x[:, :fold, 1:])
    out = out.at[:, fold:2 * fold, 1:].set(x[:, fold:2 * fold, :-1])
    out = out.at[:, 2 * fold:, :].set(x[:, 2 * fold:, :])
    return out


if __name__ == "__main__":
    # dim (=channels) = 32, shift_div = 8 -> fold = 4, batch = 2, T = 16.
    B, C, T = 2, 32, 16
    shift_div = 8

    key = jax.random.PRNGKey(0)
    x = jax.random.normal(key, (B, C, T), dtype=jnp.float32)

    out = no_param_shift(x, dim=C, shift_div=shift_div)
    out = jax.block_until_ready(out)

    ref = _reference(x, C // shift_div)
    assert out.shape == x.shape and out.dtype == x.dtype
    assert jnp.allclose(out, ref, atol=1e-6), "mismatch vs reference"

    print("KERNEL_OK")
</pallas_src>

<mosaic_0001>
module attributes {stable_mosaic.version = 11 : i64} {
  func.func @_shift_kernel(%arg0: i32, %arg1: memref<1x8x16xf32, #tpu.memory_space<vmem>>, %arg2: memref<1x8x16xf32, #tpu.memory_space<vmem>>) attributes {dimension_semantics = [#tpu.dimension_semantics<parallel>], iteration_bounds = array<i64: 2>, scalar_prefetch = 0 : i64, scratch_operands = 0 : i64, tpu.core_type = #tpu.core_type<tc>, window_params = [{transform_indices = @transform_0, window_bounds = array<i64: 1, 8, 16>}, {transform_indices = @transform_1, window_bounds = array<i64: 1, 8, 16>}]} {
    %c0 = arith.constant 0 : index
    %c0_0 = arith.constant 0 : index
    %c0_1 = arith.constant 0 : index
    %0 = vector.load %arg1[%c0, %c0_0, %c0_1] : memref<1x8x16xf32, #tpu.memory_space<vmem>>, vector<1x8x16xf32>
    %cst = arith.constant 0.000000e+00 : f32
    %1 = vector.broadcast %cst : f32 to vector<1x8x1xf32>
    %2 = vector.extract_strided_slice %0 {offsets = [0, 0, 1], sizes = [1, 8, 15], strides = [1, 1, 1]} : vector<1x8x16xf32> to vector<1x8x15xf32>
    %3 = tpu.concatenate %2, %1 in 2 : vector<1x8x15xf32>, vector<1x8x1xf32> -> vector<1x8x16xf32>
    %cst_2 = arith.constant 0.000000e+00 : f32
    %4 = vector.broadcast %cst_2 : f32 to vector<1x8x1xf32>
    %5 = vector.extract_strided_slice %0 {offsets = [0, 0, 0], sizes = [1, 8, 15], strides = [1, 1, 1]} : vector<1x8x16xf32> to vector<1x8x15xf32>
    %6 = tpu.concatenate %4, %5 in 2 : vector<1x8x1xf32>, vector<1x8x15xf32> -> vector<1x8x16xf32>
    %7 = tpu.iota {dimensions = array<i32: 1>} : vector<1x8x1xi32>
    %c4_i32 = arith.constant 4 : i32
    %8 = vector.broadcast %c4_i32 : i32 to vector<1x8x1xi32>
    %9 = arith.cmpi slt, %7, %8 : vector<1x8x1xi32>
    %10 = vector.shape_cast %9 : vector<1x8x1xi1> to vector<1x8x1xi1>
    %11 = vector.broadcast %10 : vector<1x8x1xi1> to vector<1x8x16xi1>
    %12 = arith.select %11, %3, %6 : vector<1x8x16xi1>, vector<1x8x16xf32>
    %c0_3 = arith.constant 0 : index
    %c0_4 = arith.constant 0 : index
    %c0_5 = arith.constant 0 : index
    %13 = vector.load %arg2[%c0_3, %c0_4, %c0_5] : memref<1x8x16xf32, #tpu.memory_space<vmem>>, vector<1x8x16xf32>
    tpu.vector_store %arg2[%c0_3, %c0_4, %c0_5], %12 {strides = array<i32>} : memref<1x8x16xf32, #tpu.memory_space<vmem>>, vector<1x8x16xf32>,
    return
  }
  func.func @transform_0(%arg0: i32) -> (i32, i32, i32) {
    %c0_i32 = arith.constant 0 : i32
    %c0_i32_0 = arith.constant 0 : i32
    %c0_i32_1 = arith.constant 0 : i32
    return %arg0, %c0_i32, %c0_i32_0 : i32, i32, i32
  }
  func.func @transform_1(%arg0: i32) -> (i32, i32, i32) {
    %c0_i32 = arith.constant 0 : i32
    %c0_i32_0 = arith.constant 0 : i32
    %c0_i32_1 = arith.constant 0 : i32
    return %arg0, %c0_i32, %c0_i32_0 : i32, i32, i32
  }
}

</mosaic_0001>

<llo_original>
// kernel: tpu_custom_call.1
$region0: #{tpu_custom_call.1}
  #allocation0 [shape = 'u32[]', space=smem, size = 0x4, offset = 0x4, fixed_abs, tag = 'smem constant byte address 0x4 - core index']
  #allocation1 [shape = 'u32[144,128]{1,0:T(1,128)}', space=vmem, size = 0x12000, scoped, tag = 'internal scratch']
  %s0 = inlined_call_operand.vmem [shape: f32[2,32,16], index: 0, kind: input, shape index: {}, may-alias: {0,1}]
  %s1 = inlined_call_operand.vmem [shape: f32[2,32,16], index: 1, kind: output, shape index: {}, may-alias: {0,1}]
  %s2 = sld [smem:[#allocation0]]
  $region37: #{tpu_custom_call.1} parent=0
    _
  %s4 = ssub.s32 1, %s2
  %s5 = scalar_select 0, %s4, %s2
  loop: start=0, step=1, limit=4
  $region2: #{tpu_custom_call.1} parent=0 // loop_pre_header
    _
  $region3: #{tpu_custom_call.1} parent=0 // loop_header
    %s7 = sphi 0, %s11
    %p8 = scmp.ge.s32.totalorder %s7, 4
    %s17 = sphi 0, %s19
    %s20 = sphi 0, %s17
    %s21 = sphi 0, %s20
    %s37 = sphi 0, %s21
    %s43 = sphi 0, %s45
    %s46 = sphi 0, %s43
    %s47 = sphi 0, %s46
    %s63 = sphi 0, %s47
  $region4: #{tpu_custom_call.1} parent=0 // loop_header_branch
    %10 = sbr.rel (%p8) target = $region8
  $region5: #{tpu_custom_call.1} parent=0 // loop_body
    %s12 = ssub.s32 %s7, 1
    %s13 = ssub.s32 %s7, 2
    %s14 = sadd.s32 %s7, 1
    %s15 = ssub.s32 %s7, %s14
    %p16 = scmp.eq.s32.totalorder %s15, 0
    %s18 = sadd.s32 %s17, 1
    %s19 = scalar_select %p16, %s17, %s18
    %p22 = pneg %p16
    %p23 = scmp.eq.s32.totalorder %s7, 1
    %p24 = por %p22, %p23
    %p25 = scmp.ne.s32.totalorder %s17, %s20
    %p26 = scmp.eq.s32.totalorder %s7, 0
    %p27 = por %p25, %p26
    %p28 = scmp.ne.s32.totalorder %s17, %s20
    %p29 = scmp.eq.s32.totalorder %s12, 1
    %p30 = por %p28, %p29
    %p31 = scmp.ne.s32.totalorder %s20, %s21
    %p32 = scmp.eq.s32.totalorder %s12, 0
    %p33 = por %p31, %p32
    %p34 = scmp.ne.s32.totalorder %s20, %s21
    %p35 = scmp.eq.s32.totalorder %s13, 1
    %p36 = por %p34, %p35
    %p38 = scmp.ne.s32.totalorder %s21, %s37
    %p39 = scmp.eq.s32.totalorder %s13, 0
    %p40 = por %p38, %p39
    %s41 = ssub.s32 %s7, %s14
    %p42 = scmp.eq.s32.totalorder %s41, 0
    %s44 = sadd.s32 %s43, 1
    %s45 = scalar_select %p42, %s43, %s44
    %p48 = pneg %p42
    %p49 = scmp.eq.s32.totalorder %s7, 1
    %p50 = por %p48, %p49
    %p51 = scmp.ne.s32.totalorder %s43, %s46
    %p52 = scmp.eq.s32.totalorder %s7, 0
    %p53 = por %p51, %p52
    %p54 = scmp.ne.s32.totalorder %s43, %s46
    %p55 = scmp.eq.s32.totalorder %s12, 1
    %p56 = por %p54, %p55
    %p57 = scmp.ne.s32.totalorder %s46, %s47
    %p58 = scmp.eq.s32.totalorder %s12, 0
    %p59 = por %p57, %p58
    %p60 = scmp.ne.s32.totalorder %s46, %s47
    %p61 = scmp.eq.s32.totalorder %s13, 1
    %p62 = por %p60, %p61
    %p64 = scmp.ne.s32.totalorder %s47, %s63
    %p65 = scmp.eq.s32.totalorder %s13, 0
    %p66 = por %p64, %p65
    %p67 = scmp.le.s32.totalorder 1, %s7
    %p68 = scmp.lt.s32.totalorder %s7, 3
    %p69 = pnand %p67, %p68
    %p70 = pneg %p69
    // Predicated region
    $region9: #{tpu_custom_call.1} parent=5 // pred_check
      _
    $region10: #{tpu_custom_call.1} parent=5 // pred_check_branch
      %72 = sbr.rel (%p69) target = $region12
    $region11: #{tpu_custom_call.1} parent=5 // pred_region
      %s73 = ssub.s32 %s7, 1
    $region12: #{tpu_custom_call.1} parent=5 // pred_fallthru
      _
    %p74 = scmp.lt.s32.totalorder %s7, 2
    // Predicated region
    $region13: #{tpu_custom_call.1} parent=5 // pred_check
      %p75 = pneg %p74
    $region14: #{tpu_custom_call.1} parent=5 // pred_check_branch
      %77 = sbr.rel (%p75) target = $region16
    $region15: #{tpu_custom_call.1} parent=5 // pred_region
      // Predicated region
      $region17: #{tpu_custom_call.1} parent=15 // pred_check
        %p78 = pneg %p27
      $region18: #{tpu_custom_call.1} parent=15 // pred_check_branch
        %80 = sbr.rel (%p78) target = $region20
      $region19: #{tpu_custom_call.1} parent=15 // pred_region
        %p81 = scmp.lt.s32.totalorder %s7, 1
        %s82 = scalar_select %p81, %s7, 1
        %s83 = smul.addr %s82, 4
        %s84 = smul.addr %s83, 8
        %s85 = scalar_lea.vmem %s0, %s84
      $region20: #{tpu_custom_call.1} parent=15 // pred_fallthru
        _
    $region16: #{tpu_custom_call.1} parent=5 // pred_fallthru
      _
    %p86 = scmp.le.s32.totalorder 1, %s7
    %p87 = scmp.lt.s32.totalorder %s7, 3
    %p88 = pnand %p86, %p87
    %p89 = pneg %p88
    // Predicated region
    $region21: #{tpu_custom_call.1} parent=5 // pred_check
      _
    $region22: #{tpu_custom_call.1} parent=5 // pred_check_branch
      %91 = sbr.rel (%p88) target = $region24
    $region23: #{tpu_custom_call.1} parent=5 // pred_region
      %s92 = ssub.s32 %s7, 1
      %p93 = scmp.lt.s32.totalorder %s12, 1
      %s94 = scalar_select %p93, %s12, 1
      %s95 = smul.addr %s94, 4
      %s96 = smul.addr %s95, 8
      %s97 = scalar_lea.vmem %s0, %s96
      %p98 = pneg %p33
      %p99 = pneg %p30
      %p100 = pneg %p59
      %p101 = pneg %p56
      %p102 = scmp.lt.s32.totalorder %s12, 1
      %s103 = scalar_select %p102, %s12, 1
      %s104 = smul.addr %s103, 4
      %s105 = smul.addr %s104, 8
      %s106 = scalar_lea.vmem %s1, %s105
      %p107 = scmp.lt.s32.totalorder %s12, 1
      %s108 = scalar_select %p107, %s12, 1
      %s109 = smul.addr %s108, 4
      %s110 = smul.addr %s109, 8
      %s111 = scalar_lea.vmem %s0, %s110
      %p112 = scmp.lt.s32.totalorder %s12, 1
      %s113 = scalar_select %p112, %s12, 1
      %s114 = smul.addr %s113, 4
      %s115 = smul.addr %s114, 8
      %s116 = scalar_lea.vmem %s1, %s115
      %v117 = vld [vmem:[%s111] sm:$0xff]
      %119 = vrot.lane.b32.xlu0 %v117, 127
      %v120 = vpop.permute.xlu0 %119
      %vm122 = vcmask 121856
      %v123 = vsel %vm122, %v120, 0.0
      %124 = vrot.lane.b32.xlu0 %v117, 1
      %v125 = vpop.permute.xlu0 %124
      %vm127 = vcmask 7168
      %v128 = vsel %vm127, 0.0, %v125
      %v129 = vlaneseq
      %v130 = vshrl.u32 %v129, 7
      %vm131 = vcmp.lt.s32.totalorder %v130, 4
      %v132 = vsel %vm131, 1, 0
      %vm133 = vcmp.eq.s32.totalorder %v132, 1
      %v134 = vsel %vm133, %v123, %v128
      %vm135 = vcmask 130048
      %136 = vst.msk [vmem:[%s116] sm:$0xff] %vm135, %v134
      %p137 = scmp.lt.s32.totalorder %s12, 1
      %s138 = scalar_select %p137, %s12, 1
      %s139 = smul.addr %s138, 4
      %s140 = smul.addr %s139, 8
      %s141 = scalar_lea.vmem %s1, %s140
      // Predicated region
      $region25: #{tpu_custom_call.1} parent=23 // pred_check
        %p142 = pneg %p56
      $region26: #{tpu_custom_call.1} parent=23 // pred_check_branch
        %144 = sbr.rel (%p142) target = $region28
      $region27: #{tpu_custom_call.1} parent=23 // pred_region
        _
      $region28: #{tpu_custom_call.1} parent=23 // pred_fallthru
        _
    $region24: #{tpu_custom_call.1} parent=5 // pred_fallthru
      _
    %p145 = scmp.le.s32.totalorder 2, %s7
    // Predicated region
    $region29: #{tpu_custom_call.1} parent=5 // pred_check
      %p146 = pneg %p145
    $region30: #{tpu_custom_call.1} parent=5 // pred_check_branch
      %148 = sbr.rel (%p146) target = $region32
    $region31: #{tpu_custom_call.1} parent=5 // pred_region
      %s149 = ssub.s32 %s7, 2
      // Predicated region
      $region33: #{tpu_custom_call.1} parent=31 // pred_check
        %p150 = pneg %p62
      $region34: #{tpu_custom_call.1} parent=31 // pred_check_branch
        %152 = sbr.rel (%p150) target = $region36
      $region35: #{tpu_custom_call.1} parent=31 // pred_region
        %p153 = scmp.lt.s32.totalorder %s13, 1
        %s154 = scalar_select %p153, %s13, 1
        %s155 = smul.addr %s154, 4
        %s156 = smul.addr %s155, 8
        %s157 = scalar_lea.vmem %s1, %s156
      $region36: #{tpu_custom_call.1} parent=31 // pred_fallthru
        _
    $region32: #{tpu_custom_call.1} parent=5 // pred_fallthru
      _
  $region6: #{tpu_custom_call.1} parent=0 // loop_footer
    %s11 = sadd.s32 1, %s7
  $region7: #{tpu_custom_call.1} parent=0 // loop_footer_branch
    %6 = sbr.rel target = $region3
  $region8: #{tpu_custom_call.1} parent=0 // loop_exit
    _

</llo_original>
